<compile_context>
chip_gen: v7x
topology: tpu7x:2x2x1
jax: 0.10.0
libtpu: 0.0.40
codegen_flags: <defaults>
</compile_context>

<pallas_src>
import jax
import jax.numpy as jnp
from jax.experimental import pallas as pl
from jax.experimental.pallas import tpu as pltpu


def attention_kernel(emb_ref, hid_ref, enc_ref,
                     w1e_ref, w1h_ref, b1_ref, w2_ref, b2_ref,
                     out_ref):
    """Fused attention hot path for one batch tile.

    emb_ref : [tb, emb_dim]          squeezed embedding
    hid_ref : [tb, 2*hid_dim]        final encoder hidden layer
    enc_ref : [tb, S, 2*hid_dim]     encoder outputs (S == max_len)
    w1e_ref : [emb_dim, 2*max_len]   rows of Linear1 weight acting on embedding
    w1h_ref : [2*hid_dim, 2*max_len] rows of Linear1 weight acting on hidden
    b1_ref  : [1, 2*max_len]         f32
    w2_ref  : [2*max_len, max_len]
    b2_ref  : [1, max_len]           f32
    out_ref : [tb, 2*hid_dim]        lane- and sublane-dense output slab
    """
    # Linear 1 (split-w1: concat(emb, hid) @ w1 == emb @ w1e + hid @ w1h) + ReLU.
    # Two accumulating MXU dots, f32 accumulation (bf16-native inputs on v6e/v7x).
    h = (jnp.dot(emb_ref[...], w1e_ref[...], preferred_element_type=jnp.float32)
         + jnp.dot(hid_ref[...], w1h_ref[...], preferred_element_type=jnp.float32)
         + b1_ref[...])
    h = jnp.maximum(h, 0.0)
    # TODO(synk): nn.Dropout(0.3) is identity here (inference-mode kernel only).

    # Linear 2 -> attention scores [tb, max_len].  Keep h in f32 (tiny matmul;
    # kernel is HBM-bound, so precision > MXU throughput here).
    scores = (jnp.dot(h, w2_ref[...].astype(jnp.float32),
                      preferred_element_type=jnp.float32)
              + b2_ref[...])

    # Softmax over the max_len axis (lane reduce); exact division.
    m = jnp.max(scores, axis=1, keepdims=True)
    e = jnp.exp(scores - m)
    weights = e / jnp.sum(e, axis=1, keepdims=True)          # [tb, S] f32

    # torch.bmm(encoder_outputs.permute(0,2,1), weights.unsqueeze(2)).squeeze(2)
    # as a VPU broadcast-multiply + sublane reduce: each (S=8, H2=128) f32 slice
    # is exactly one vreg, so this stays off the MXU entirely.
    attn = jnp.sum(weights[:, :, None] * enc_ref[...].astype(jnp.float32),
                   axis=1)                                    # [tb, H2] f32

    out_ref[...] = attn.astype(out_ref.dtype)


def _pick_block_b(B):
    """Batch-tile size: big enough to amortize per-step overhead (~0.35us),
    small enough to bound VMEM and give >=2 'parallel' steps for v7x's 2 TCs."""
    cap = 512                       # ~85% of HBM roofline per measured tiling data;
                                    # larger stops helping on v5e's 128-row MXU.
    block_b = min(B, cap)
    if B >= 16:                     # ensure >=2 grid steps when B allows it
        block_b = min(block_b, (B + 1) // 2)
    if block_b >= 8:
        block_b = (block_b // 8) * 8   # sublane-aligned; ragged tail handled by Pallas
    else:
        block_b = B                    # tiny batch: whole-array block
    return block_b


def attention_forward(encoder_outputs, encoder_hidden, embedding, params,
                      *, compute_dtype=jnp.bfloat16):
    """Wrapper: cheap slicing/casting in JAX, all compute in one Pallas call."""
    w1, b1, w2, b2 = params
    B, S, H2 = encoder_outputs.shape
    emb_dim = embedding.shape[-1]
    max_len = w2.shape[1]
    # The bmm in the original forward requires seq_len == max_len.
    assert S == max_len, f"seq_len ({S}) must equal max_len ({max_len})"
    assert w1.shape[0] == emb_dim + H2

    final_hidden = encoder_hidden[-1, :, :]                   # [B, 2*hid_dim]
    emb = embedding[:, 0, :]                                  # [B, emb_dim]

    # Split Linear1 weight once (tiny weight slices) so the kernel avoids the
    # activation concat and its HBM round-trip.
    w1e = w1[:emb_dim, :]                                     # [emb_dim, 2*max_len]
    w1h = w1[emb_dim:, :]                                     # [2*hid_dim, 2*max_len]

    # Cast the HBM-dominant inputs (and the weight operands of the MXU dots) to
    # the compute dtype; biases and all accumulation stay float32.
    cd = compute_dtype
    emb_c = emb.astype(cd)
    hid_c = final_hidden.astype(cd)
    enc_c = encoder_outputs.astype(cd)
    w1e_c = w1e.astype(cd)
    w1h_c = w1h.astype(cd)
    w2_c = w2.astype(cd)
    b1_c = b1.astype(jnp.float32).reshape(1, -1)
    b2_c = b2.astype(jnp.float32).reshape(1, -1)

    block_b = _pick_block_b(B)
    grid = (pl.cdiv(B, block_b),)

    # Explicit VMEM budget: double-buffered inputs/output + resident weights,
    # with headroom.  Capped at 32 MiB (default on v6e/v7x, safe on v7x's
    # 64 MiB physical, and above v5e's 16 MiB default so bigger tiles compile).
    in_bytes = jnp.dtype(cd).itemsize
    per_step = block_b * ((S * H2 + H2 + emb_dim) * in_bytes + H2 * 4)
    weight_bytes = ((w1e_c.size + w1h_c.size + w2_c.size) * in_bytes
                    + (b1_c.size + b2_c.size) * 4)
    est = 2 * per_step + 2 * weight_bytes
    vmem_limit = int(min(max(4 * est, 8 << 20), 32 << 20))

    const2 = lambda i: (0, 0)
    out2d = pl.pallas_call(
        attention_kernel,
        out_shape=jax.ShapeDtypeStruct((B, H2), encoder_outputs.dtype),
        grid=grid,
        in_specs=[
            pl.BlockSpec((block_b, emb_dim), lambda i: (i, 0)),
            pl.BlockSpec((block_b, H2), lambda i: (i, 0)),
            pl.BlockSpec((block_b, S, H2), lambda i: (i, 0, 0)),
            pl.BlockSpec(w1e_c.shape, const2),   # weights stay VMEM-resident
            pl.BlockSpec(w1h_c.shape, const2),
            pl.BlockSpec(b1_c.shape, const2),
            pl.BlockSpec(w2_c.shape, const2),
            pl.BlockSpec(b2_c.shape, const2),
        ],
        out_specs=pl.BlockSpec((block_b, H2), lambda i: (i, 0)),
        compiler_params=pltpu.CompilerParams(
            dimension_semantics=("parallel",),
            vmem_limit_bytes=vmem_limit),
    )(emb_c, hid_c, enc_c, w1e_c, w1h_c, b1_c, w2_c, b2_c)

    # Free reshape to the PyTorch output shape [B, 1, 2*hid_dim].
    return out2d[:, None, :]


def attention_reference(encoder_outputs, encoder_hidden, embedding, params):
    """Pure-JAX reference (mirrors the PyTorch forward) for a correctness check."""
    w1, b1, w2, b2 = params
    final_hidden = encoder_hidden[-1, :, :]
    tmp = jnp.concatenate([embedding[:, 0, :], final_hidden], 1)
    h = jnp.maximum(tmp @ w1 + b1, 0.0)
    scores = h @ w2 + b2
    weights = jax.nn.softmax(scores, axis=1)
    attn = jnp.einsum('bs,bsh->bh', weights, encoder_outputs)
    return attn[:, None, :]


if __name__ == "__main__":
    # Module hyper-params: hid_dim=64 so 2*hid_dim=128 (lane-dense output).
    hid_dim, emb_dim, max_len = 64, 32, 8
    batch, num_layers = 16, 2
    seq_len = max_len                      # bmm requires seq_len == max_len

    in_dim = hid_dim * 2 + emb_dim         # 160
    mid_dim = 2 * max_len                  # 16

    key = jax.random.PRNGKey(0)
    ks = jax.random.split(key, 7)

    # Deterministic synthetic parameters (Linear1, Linear2), stored [in, out].
    w1 = 0.1 * jax.random.normal(ks[0], (in_dim, mid_dim), jnp.float32)
    b1 = 0.1 * jax.random.normal(ks[1], (1, mid_dim), jnp.float32)
    w2 = 0.1 * jax.random.normal(ks[2], (mid_dim, max_len), jnp.float32)
    b2 = 0.1 * jax.random.normal(ks[3], (1, max_len), jnp.float32)
    params = (w1, b1, w2, b2)

    # Deterministic synthetic inputs.
    encoder_outputs = jax.random.normal(ks[4], (batch, seq_len, hid_dim * 2), jnp.float32)
    encoder_hidden = jax.random.normal(ks[5], (num_layers, batch, hid_dim * 2), jnp.float32)
    embedding = jax.random.normal(ks[6], (batch, 1, emb_dim), jnp.float32)

    ref = attention_reference(encoder_outputs, encoder_hidden, embedding, params)

    # 1) float32 compute path: exact parity with the PyTorch-equivalent reference.
    out_f32 = attention_forward(encoder_outputs, encoder_hidden, embedding, params,
                                compute_dtype=jnp.float32)
    out_f32 = jax.block_until_ready(out_f32)
    assert out_f32.shape == (batch, 1, hid_dim * 2), out_f32.shape
    assert jnp.allclose(out_f32, ref, atol=1e-3, rtol=1e-3), "f32 mismatch vs reference"

    # 2) bf16-input compute path (default: halves HBM traffic on v6e/v7x),
    #    f32 accumulation.  Looser tolerance only because inputs are rounded
    #    to bfloat16 at the boundary.
    out_bf16 = attention_forward(encoder_outputs, encoder_hidden, embedding, params)
    out_bf16 = jax.block_until_ready(out_bf16)
    assert out_bf16.shape == (batch, 1, hid_dim * 2), out_bf16.shape
    assert jnp.allclose(out_bf16, ref, atol=5e-2, rtol=5e-2), "bf16 mismatch vs reference"

    print("KERNEL_OK")
</pallas_src>

<mosaic_0001>
module attributes {stable_mosaic.version = 11 : i64} {
  func.func @attention_kernel(%arg0: i32, %arg1: memref<8x32xf32, #tpu.memory_space<vmem>>, %arg2: memref<8x128xf32, #tpu.memory_space<vmem>>, %arg3: memref<8x8x128xf32, #tpu.memory_space<vmem>>, %arg4: memref<32x16xf32, #tpu.memory_space<vmem>>, %arg5: memref<128x16xf32, #tpu.memory_space<vmem>>, %arg6: memref<1x16xf32, #tpu.memory_space<vmem>>, %arg7: memref<16x8xf32, #tpu.memory_space<vmem>>, %arg8: memref<1x8xf32, #tpu.memory_space<vmem>>, %arg9: memref<8x128xf32, #tpu.memory_space<vmem>>) attributes {dimension_semantics = [#tpu.dimension_semantics<parallel>], iteration_bounds = array<i64: 2>, scalar_prefetch = 0 : i64, scratch_operands = 0 : i64, tpu.core_type = #tpu.core_type<tc>, window_params = [{transform_indices = @transform_0, window_bounds = array<i64: 8, 32>}, {transform_indices = @transform_1, window_bounds = array<i64: 8, 128>}, {transform_indices = @transform_2, window_bounds = array<i64: 8, 8, 128>}, {pipeline_mode = #tpu.pipeline_mode<synchronous>, transform_indices = @transform_3, window_bounds = array<i64: 32, 16>}, {pipeline_mode = #tpu.pipeline_mode<synchronous>, transform_indices = @transform_4, window_bounds = array<i64: 128, 16>}, {pipeline_mode = #tpu.pipeline_mode<synchronous>, transform_indices = @transform_5, window_bounds = array<i64: 1, 16>}, {pipeline_mode = #tpu.pipeline_mode<synchronous>, transform_indices = @transform_6, window_bounds = array<i64: 16, 8>}, {pipeline_mode = #tpu.pipeline_mode<synchronous>, transform_indices = @transform_7, window_bounds = array<i64: 1, 8>}, {transform_indices = @transform_8, window_bounds = array<i64: 8, 128>}]} {
    %c0 = arith.constant 0 : index
    %c0_0 = arith.constant 0 : index
    %0 = vector.load %arg1[%c0, %c0_0] : memref<8x32xf32, #tpu.memory_space<vmem>>, vector<8x32xf32>
    %c0_1 = arith.constant 0 : index
    %c0_2 = arith.constant 0 : index
    %1 = vector.load %arg4[%c0_1, %c0_2] : memref<32x16xf32, #tpu.memory_space<vmem>>, vector<32x16xf32>
    %cst = arith.constant dense<0.000000e+00> : vector<8x16xf32>
    %2 = tpu.matmul %0, %1, %cst {dimension_numbers = #tpu.dot_dimension_numbers<[1], [0], [0], [1], [0, 0, 1, 1], [], []>} : vector<8x32xf32>, vector<32x16xf32>, vector<8x16xf32> -> vector<8x16xf32>
    %c0_3 = arith.constant 0 : index
    %c0_4 = arith.constant 0 : index
    %3 = vector.load %arg2[%c0_3, %c0_4] : memref<8x128xf32, #tpu.memory_space<vmem>>, vector<8x128xf32>
    %c0_5 = arith.constant 0 : index
    %c0_6 = arith.constant 0 : index
    %4 = vector.load %arg5[%c0_5, %c0_6] : memref<128x16xf32, #tpu.memory_space<vmem>>, vector<128x16xf32>
    %cst_7 = arith.constant dense<0.000000e+00> : vector<8x16xf32>
    %5 = tpu.matmul %3, %4, %cst_7 {dimension_numbers = #tpu.dot_dimension_numbers<[1], [0], [0], [1], [0, 0, 1, 1], [], []>} : vector<8x128xf32>, vector<128x16xf32>, vector<8x16xf32> -> vector<8x16xf32>
    %6 = arith.addf %2, %5 : vector<8x16xf32>
    %c0_8 = arith.constant 0 : index
    %c0_9 = arith.constant 0 : index
    %7 = vector.load %arg6[%c0_8, %c0_9] : memref<1x16xf32, #tpu.memory_space<vmem>>, vector<1x16xf32>
    %8 = vector.broadcast %7 : vector<1x16xf32> to vector<8x16xf32>
    %9 = arith.addf %6, %8 : vector<8x16xf32>
    %cst_10 = arith.constant 0.000000e+00 : f32
    %10 = vector.broadcast %cst_10 : f32 to vector<8x16xf32>
    %11 = arith.maximumf %9, %10 : vector<8x16xf32>
    %c0_11 = arith.constant 0 : index
    %c0_12 = arith.constant 0 : index
    %12 = vector.load %arg7[%c0_11, %c0_12] : memref<16x8xf32, #tpu.memory_space<vmem>>, vector<16x8xf32>
    %cst_13 = arith.constant dense<0.000000e+00> : vector<8x8xf32>
    %13 = tpu.matmul %11, %12, %cst_13 {dimension_numbers = #tpu.dot_dimension_numbers<[1], [0], [0], [1], [0, 0, 1, 1], [], []>} : vector<8x16xf32>, vector<16x8xf32>, vector<8x8xf32> -> vector<8x8xf32>
    %c0_14 = arith.constant 0 : index
    %c0_15 = arith.constant 0 : index
    %14 = vector.load %arg8[%c0_14, %c0_15] : memref<1x8xf32, #tpu.memory_space<vmem>>, vector<1x8xf32>
    %15 = vector.broadcast %14 : vector<1x8xf32> to vector<8x8xf32>
    %16 = arith.addf %13, %15 : vector<8x8xf32>
    %cst_16 = arith.constant dense<0xFF800000> : vector<8xf32>
    %17 = vector.multi_reduction <maximumf>, %16, %cst_16 [1] : vector<8x8xf32> to vector<8xf32>
    %18 = vector.shape_cast %17 : vector<8xf32> to vector<8x1xf32>
    %19 = vector.broadcast %18 : vector<8x1xf32> to vector<8x8xf32>
    %20 = arith.subf %16, %19 : vector<8x8xf32>
    %21 = math.exp %20 : vector<8x8xf32>
    %cst_17 = arith.constant dense<0.000000e+00> : vector<8xf32>
    %22 = vector.multi_reduction <add>, %21, %cst_17 [1] : vector<8x8xf32> to vector<8xf32>
    %23 = vector.shape_cast %22 : vector<8xf32> to vector<8x1xf32>
    %24 = vector.broadcast %23 : vector<8x1xf32> to vector<8x8xf32>
    %25 = arith.divf %21, %24 : vector<8x8xf32>
    %26 = vector.shape_cast %25 : vector<8x8xf32> to vector<8x8x1xf32>
    %c0_18 = arith.constant 0 : index
    %c0_19 = arith.constant 0 : index
    %c0_20 = arith.constant 0 : index
    %27 = vector.load %arg3[%c0_18, %c0_19, %c0_20] : memref<8x8x128xf32, #tpu.memory_space<vmem>>, vector<8x8x128xf32>
    %28 = vector.broadcast %26 : vector<8x8x1xf32> to vector<8x8x128xf32>
    %29 = arith.mulf %28, %27 : vector<8x8x128xf32>
    %cst_21 = arith.constant dense<0.000000e+00> : vector<8x128xf32>
    %30 = vector.multi_reduction <add>, %29, %cst_21 [1] : vector<8x8x128xf32> to vector<8x128xf32>
    %c0_22 = arith.constant 0 : index
    %c0_23 = arith.constant 0 : index
    %31 = vector.load %arg9[%c0_22, %c0_23] : memref<8x128xf32, #tpu.memory_space<vmem>>, vector<8x128xf32>
    tpu.vector_store %arg9[%c0_22, %c0_23], %30 {strides = array<i32>} : memref<8x128xf32, #tpu.memory_space<vmem>>, vector<8x128xf32>,
    return
  }
  func.func @transform_0(%arg0: i32) -> (i32, i32) {
    %c0_i32 = arith.constant 0 : i32
    %c0_i32_0 = arith.constant 0 : i32
    return %arg0, %c0_i32 : i32, i32
  }
  func.func @transform_1(%arg0: i32) -> (i32, i32) {
    %c0_i32 = arith.constant 0 : i32
    %c0_i32_0 = arith.constant 0 : i32
    return %arg0, %c0_i32 : i32, i32
  }
  func.func @transform_2(%arg0: i32) -> (i32, i32, i32) {
    %c0_i32 = arith.constant 0 : i32
    %c0_i32_0 = arith.constant 0 : i32
    %c0_i32_1 = arith.constant 0 : i32
    return %arg0, %c0_i32, %c0_i32_0 : i32, i32, i32
  }
  func.func @transform_3(%arg0: i32) -> (i32, i32) {
    %c0_i32 = arith.constant 0 : i32
    %c0_i32_0 = arith.constant 0 : i32
    %c0_i32_1 = arith.constant 0 : i32
    return %c0_i32, %c0_i32_0 : i32, i32
  }
  func.func @transform_4(%arg0: i32) -> (i32, i32) {
    %c0_i32 = arith.constant 0 : i32
    %c0_i32_0 = arith.constant 0 : i32
    %c0_i32_1 = arith.constant 0 : i32
    return %c0_i32, %c0_i32_0 : i32, i32
  }
  func.func @transform_5(%arg0: i32) -> (i32, i32) {
    %c0_i32 = arith.constant 0 : i32
    %c0_i32_0 = arith.constant 0 : i32
    %c0_i32_1 = arith.constant 0 : i32
    return %c0_i32, %c0_i32_0 : i32, i32
  }
  func.func @transform_6(%arg0: i32) -> (i32, i32) {
    %c0_i32 = arith.constant 0 : i32
    %c0_i32_0 = arith.constant 0 : i32
    %c0_i32_1 = arith.constant 0 : i32
    return %c0_i32, %c0_i32_0 : i32, i32
  }
  func.func @transform_7(%arg0: i32) -> (i32, i32) {
    %c0_i32 = arith.constant 0 : i32
    %c0_i32_0 = arith.constant 0 : i32
    %c0_i32_1 = arith.constant 0 : i32
    return %c0_i32, %c0_i32_0 : i32, i32
  }
  func.func @transform_8(%arg0: i32) -> (i32, i32) {
    %c0_i32 = arith.constant 0 : i32
    %c0_i32_0 = arith.constant 0 : i32
    return %arg0, %c0_i32 : i32, i32
  }
}

</mosaic_0001>

<llo_original>
// kernel: tpu_custom_call.1
$region0: #{tpu_custom_call.1}
  #allocation0 [shape = 'u32[]', space=smem, size = 0x4, offset = 0x4, fixed_abs, tag = 'smem constant byte address 0x4 - core index']
  #allocation1 [shape = 'u32[144,128]{1,0:T(1,128)}', space=vmem, size = 0x12000, scoped, tag = 'internal scratch']
  %s0 = inlined_call_operand.vmem [shape: f32[16,32], index: 0, kind: input, shape index: {}]
  %s1 = inlined_call_operand.vmem [shape: f32[16,128], index: 1, kind: input, shape index: {}]
  %s2 = inlined_call_operand.vmem [shape: f32[16,8,128], index: 2, kind: input, shape index: {}]
  %s3 = inlined_call_operand.vmem [shape: f32[32,16], index: 3, kind: input, shape index: {}]
  %s4 = inlined_call_operand.vmem [shape: f32[128,16], index: 4, kind: input, shape index: {}]
  %s5 = inlined_call_operand.vmem [shape: f32[1,16], index: 5, kind: input, shape index: {}]
  %s6 = inlined_call_operand.vmem [shape: f32[16,8], index: 6, kind: input, shape index: {}]
  %s7 = inlined_call_operand.vmem [shape: f32[1,8], index: 7, kind: input, shape index: {}]
  %s8 = inlined_call_operand.hbm [shape: f32[16,128], index: 8, kind: output, shape index: {}]
  %s9 = sld [smem:[#allocation0]]
  $region65: #{tpu_custom_call.1} parent=0
    _
  %s11 = ssub.s32 1, %s9
  %s12 = scalar_select 0, %s11, %s9
  $region1: #{tpu_custom_call.1} parent=0
    #allocation2 [shape = 'u8[8192]{0}', space=vmem, size = 0x2000, scoped, tag = 'output window, operand 0']
    #allocation3 [shape = 's32[2]{0}', space=sflag, size = 0x8, scoped, tag = 'scoped memory for tpu_custom_call.1']
    %13 = vsyncpa [#allocation3], 0
    %s14 = scalar_lea.sflag [#allocation3], 1
    %15 = vsyncpa %s14, 0
    loop: start=0, step=1, limit=4
    $region2: #{tpu_custom_call.1} parent=1 // loop_pre_header
      _
    $region3: #{tpu_custom_call.1} parent=1 // loop_header
      %s17 = sphi 0, %s21
      %p18 = scmp.ge.s32.totalorder %s17, 4
      %s27 = sphi 0, %s29
      %s30 = sphi 0, %s27
      %s31 = sphi 0, %s30
      %s47 = sphi 0, %s31
      %s53 = sphi 0, %s55
      %s56 = sphi 0, %s53
      %s57 = sphi 0, %s56
      %s73 = sphi 0, %s57
      %s79 = sphi 0, %s81
      %s82 = sphi 0, %s79
      %s83 = sphi 0, %s82
      %s99 = sphi 0, %s83
      %s103 = sphi 0, %s103
      %s105 = sphi 0, %s103
      %s106 = sphi 0, %s105
      %s120 = sphi 0, %s106
      %s124 = sphi 0, %s124
      %s126 = sphi 0, %s124
      %s127 = sphi 0, %s126
      %s141 = sphi 0, %s127
      %s145 = sphi 0, %s145
      %s147 = sphi 0, %s145
      %s148 = sphi 0, %s147
      %s162 = sphi 0, %s148
      %s166 = sphi 0, %s166
      %s168 = sphi 0, %s166
      %s169 = sphi 0, %s168
      %s183 = sphi 0, %s169
      %s187 = sphi 0, %s187
      %s189 = sphi 0, %s187
      %s190 = sphi 0, %s189
      %s204 = sphi 0, %s190
      %s210 = sphi 0, %s212
      %s213 = sphi 0, %s210
      %s214 = sphi 0, %s213
      %s230 = sphi 0, %s214
    $region4: #{tpu_custom_call.1} parent=1 // loop_header_branch
      %20 = sbr.rel (%p18) target = $region8
    $region5: #{tpu_custom_call.1} parent=1 // loop_body
      %s22 = ssub.s32 %s17, 1
      %s23 = ssub.s32 %s17, 2
      %s24 = sadd.s32 %s17, 1
      %s25 = ssub.s32 %s17, %s24
      %p26 = scmp.eq.s32.totalorder %s25, 0
      %s28 = sadd.s32 %s27, 1
      %s29 = scalar_select %p26, %s27, %s28
      %p32 = pneg %p26
      %p33 = scmp.eq.s32.totalorder %s17, 1
      %p34 = por %p32, %p33
      %p35 = scmp.ne.s32.totalorder %s27, %s30
      %p36 = scmp.eq.s32.totalorder %s17, 0
      %p37 = por %p35, %p36
      %p38 = scmp.ne.s32.totalorder %s27, %s30
      %p39 = scmp.eq.s32.totalorder %s22, 1
      %p40 = por %p38, %p39
      %p41 = scmp.ne.s32.totalorder %s30, %s31
      %p42 = scmp.eq.s32.totalorder %s22, 0
      %p43 = por %p41, %p42
      %p44 = scmp.ne.s32.totalorder %s30, %s31
      %p45 = scmp.eq.s32.totalorder %s23, 1
      %p46 = por %p44, %p45
      %p48 = scmp.ne.s32.totalorder %s31, %s47
      %p49 = scmp.eq.s32.totalorder %s23, 0
      %p50 = por %p48, %p49
      %s51 = ssub.s32 %s17, %s24
      %p52 = scmp.eq.s32.totalorder %s51, 0
      %s54 = sadd.s32 %s53, 1
      %s55 = scalar_select %p52, %s53, %s54
      %p58 = pneg %p52
      %p59 = scmp.eq.s32.totalorder %s17, 1
      %p60 = por %p58, %p59
      %p61 = scmp.ne.s32.totalorder %s53, %s56
      %p62 = scmp.eq.s32.totalorder %s17, 0
      %p63 = por %p61, %p62
      %p64 = scmp.ne.s32.totalorder %s53, %s56
      %p65 = scmp.eq.s32.totalorder %s22, 1
      %p66 = por %p64, %p65
      %p67 = scmp.ne.s32.totalorder %s56, %s57
      %p68 = scmp.eq.s32.totalorder %s22, 0
      %p69 = por %p67, %p68
      %p70 = scmp.ne.s32.totalorder %s56, %s57
      %p71 = scmp.eq.s32.totalorder %s23, 1
      %p72 = por %p70, %p71
      %p74 = scmp.ne.s32.totalorder %s57, %s73
      %p75 = scmp.eq.s32.totalorder %s23, 0
      %p76 = por %p74, %p75
      %s77 = ssub.s32 %s17, %s24
      %p78 = scmp.eq.s32.totalorder %s77, 0
      %s80 = sadd.s32 %s79, 1
      %s81 = scalar_select %p78, %s79, %s80
      %p84 = pneg %p78
      %p85 = scmp.eq.s32.totalorder %s17, 1
      %p86 = por %p84, %p85
      %p87 = scmp.ne.s32.totalorder %s79, %s82
      %p88 = scmp.eq.s32.totalorder %s17, 0
      %p89 = por %p87, %p88
      %p90 = scmp.ne.s32.totalorder %s79, %s82
      %p91 = scmp.eq.s32.totalorder %s22, 1
      %p92 = por %p90, %p91
      %p93 = scmp.ne.s32.totalorder %s82, %s83
      %p94 = scmp.eq.s32.totalorder %s22, 0
      %p95 = por %p93, %p94
      %p96 = scmp.ne.s32.totalorder %s82, %s83
      %p97 = scmp.eq.s32.totalorder %s23, 1
      %p98 = por %p96, %p97
      %p100 = scmp.ne.s32.totalorder %s83, %s99
      %p101 = scmp.eq.s32.totalorder %s23, 0
      %p102 = por %p100, %p101
      %s104 = sadd.s32 %s103, 1
      %p107 = scmp.eq.s32.totalorder %s17, 1
      %p108 = scmp.ne.s32.totalorder %s103, %s105
      %p109 = scmp.eq.s32.totalorder %s17, 0
      %p110 = por %p108, %p109
      %p111 = scmp.ne.s32.totalorder %s103, %s105
      %p112 = scmp.eq.s32.totalorder %s22, 1
      %p113 = por %p111, %p112
      %p114 = scmp.ne.s32.totalorder %s105, %s106
      %p115 = scmp.eq.s32.totalorder %s22, 0
      %p116 = por %p114, %p115
      %p117 = scmp.ne.s32.totalorder %s105, %s106
      %p118 = scmp.eq.s32.totalorder %s23, 1
      %p119 = por %p117, %p118
      %p121 = scmp.ne.s32.totalorder %s106, %s120
      %p122 = scmp.eq.s32.totalorder %s23, 0
      %p123 = por %p121, %p122
      %s125 = sadd.s32 %s124, 1
      %p128 = scmp.eq.s32.totalorder %s17, 1
      %p129 = scmp.ne.s32.totalorder %s124, %s126
      %p130 = scmp.eq.s32.totalorder %s17, 0
      %p131 = por %p129, %p130
      %p132 = scmp.ne.s32.totalorder %s124, %s126
      %p133 = scmp.eq.s32.totalorder %s22, 1
      %p134 = por %p132, %p133
      %p135 = scmp.ne.s32.totalorder %s126, %s127
      %p136 = scmp.eq.s32.totalorder %s22, 0
      %p137 = por %p135, %p136
      %p138 = scmp.ne.s32.totalorder %s126, %s127
      %p139 = scmp.eq.s32.totalorder %s23, 1
      %p140 = por %p138, %p139
      %p142 = scmp.ne.s32.totalorder %s127, %s141
      %p143 = scmp.eq.s32.totalorder %s23, 0
      %p144 = por %p142, %p143
      %s146 = sadd.s32 %s145, 1
      %p149 = scmp.eq.s32.totalorder %s17, 1
      %p150 = scmp.ne.s32.totalorder %s145, %s147
      %p151 = scmp.eq.s32.totalorder %s17, 0
      %p152 = por %p150, %p151
      %p153 = scmp.ne.s32.totalorder %s145, %s147
      %p154 = scmp.eq.s32.totalorder %s22, 1
      %p155 = por %p153, %p154
      %p156 = scmp.ne.s32.totalorder %s147, %s148
      %p157 = scmp.eq.s32.totalorder %s22, 0
      %p158 = por %p156, %p157
      %p159 = scmp.ne.s32.totalorder %s147, %s148
      %p160 = scmp.eq.s32.totalorder %s23, 1
      %p161 = por %p159, %p160
      %p163 = scmp.ne.s32.totalorder %s148, %s162
      %p164 = scmp.eq.s32.totalorder %s23, 0
      %p165 = por %p163, %p164
      %s167 = sadd.s32 %s166, 1
      %p170 = scmp.eq.s32.totalorder %s17, 1
      %p171 = scmp.ne.s32.totalorder %s166, %s168
      %p172 = scmp.eq.s32.totalorder %s17, 0
      %p173 = por %p171, %p172
      %p174 = scmp.ne.s32.totalorder %s166, %s168
      %p175 = scmp.eq.s32.totalorder %s22, 1
      %p176 = por %p174, %p175
      %p177 = scmp.ne.s32.totalorder %s168, %s169
      %p178 = scmp.eq.s32.totalorder %s22, 0
      %p179 = por %p177, %p178
      %p180 = scmp.ne.s32.totalorder %s168, %s169
      %p181 = scmp.eq.s32.totalorder %s23, 1
      %p182 = por %p180, %p181
      %p184 = scmp.ne.s32.totalorder %s169, %s183
      %p185 = scmp.eq.s32.totalorder %s23, 0
      %p186 = por %p184, %p185
      %s188 = sadd.s32 %s187, 1
      %p191 = scmp.eq.s32.totalorder %s17, 1
      %p192 = scmp.ne.s32.totalorder %s187, %s189
      %p193 = scmp.eq.s32.totalorder %s17, 0
      %p194 = por %p192, %p193
      %p195 = scmp.ne.s32.totalorder %s187, %s189
      %p196 = scmp.eq.s32.totalorder %s22, 1
      %p197 = por %p195, %p196
      %p198 = scmp.ne.s32.totalorder %s189, %s190
      %p199 = scmp.eq.s32.totalorder %s22, 0
      %p200 = por %p198, %p199
      %p201 = scmp.ne.s32.totalorder %s189, %s190
      %p202 = scmp.eq.s32.totalorder %s23, 1
      %p203 = por %p201, %p202
      %p205 = scmp.ne.s32.totalorder %s190, %s204
      %p206 = scmp.eq.s32.totalorder %s23, 0
      %p207 = por %p205, %p206
      %s208 = ssub.s32 %s17, %s24
      %p209 = scmp.eq.s32.totalorder %s208, 0
      %s211 = sadd.s32 %s210, 1
      %s212 = scalar_select %p209, %s210, %s211
      %p215 = pneg %p209
      %p216 = scmp.eq.s32.totalorder %s17, 1
      %p217 = por %p215, %p216
      %p218 = scmp.ne.s32.totalorder %s210, %s213
      %p219 = scmp.eq.s32.totalorder %s17, 0
      %p220 = por %p218, %p219
      %p221 = scmp.ne.s32.totalorder %s210, %s213
      %p222 = scmp.eq.s32.totalorder %s22, 1
      %p223 = por %p221, %p222
      %p224 = scmp.ne.s32.totalorder %s213, %s214
      %p225 = scmp.eq.s32.totalorder %s22, 0
      %p226 = por %p224, %p225
      %p227 = scmp.ne.s32.totalorder %s213, %s214
      %p228 = scmp.eq.s32.totalorder %s23, 1
      %p229 = por %p227, %p228
      %p231 = scmp.ne.s32.totalorder %s214, %s230
      %p232 = scmp.eq.s32.totalorder %s23, 0
      %p233 = por %p231, %p232
      %p234 = scmp.le.s32.totalorder 1, %s17
      %p235 = scmp.lt.s32.totalorder %s17, 3
      %p236 = pnand %p234, %p235
      %p237 = pneg %p236
      // Predicated region
      $region9: #{tpu_custom_call.1} parent=5 // pred_check
        _
      $region10: #{tpu_custom_call.1} parent=5 // pred_check_branch
        %239 = sbr.rel (%p236) target = $region12
      $region11: #{tpu_custom_call.1} parent=5 // pred_region
        %s240 = ssub.s32 %s17, 1
        // Predicated region
        $region13: #{tpu_custom_call.1} parent=11 // pred_check
          %p241 = pneg %p116
        $region14: #{tpu_custom_call.1} parent=11 // pred_check_branch
          %243 = sbr.rel (%p241) target = $region16
        $region15: #{tpu_custom_call.1} parent=11 // pred_region
          _
        $region16: #{tpu_custom_call.1} parent=11 // pred_fallthru
          _
        // Predicated region
        $region17: #{tpu_custom_call.1} parent=11 // pred_check
          %p244 = pneg %p137
        $region18: #{tpu_custom_call.1} parent=11 // pred_check_branch
          %246 = sbr.rel (%p244) target = $region20
        $region19: #{tpu_custom_call.1} parent=11 // pred_region
          _
        $region20: #{tpu_custom_call.1} parent=11 // pred_fallthru
          _
        // Predicated region
        $region21: #{tpu_custom_call.1} parent=11 // pred_check
          %p247 = pneg %p158
        $region22: #{tpu_custom_call.1} parent=11 // pred_check_branch
          %249 = sbr.rel (%p247) target = $region24
        $region23: #{tpu_custom_call.1} parent=11 // pred_region
          _
        $region24: #{tpu_custom_call.1} parent=11 // pred_fallthru
          _
        // Predicated region
        $region25: #{tpu_custom_call.1} parent=11 // pred_check
          %p250 = pneg %p179
        $region26: #{tpu_custom_call.1} parent=11 // pred_check_branch
          %252 = sbr.rel (%p250) target = $region28
        $region27: #{tpu_custom_call.1} parent=11 // pred_region
          _
        $region28: #{tpu_custom_call.1} parent=11 // pred_fallthru
          _
        // Predicated region
        $region29: #{tpu_custom_call.1} parent=11 // pred_check
          %p253 = pneg %p200
        $region30: #{tpu_custom_call.1} parent=11 // pred_check_branch
          %255 = sbr.rel (%p253) target = $region32
        $region31: #{tpu_custom_call.1} parent=11 // pred_region
          _
        $region32: #{tpu_custom_call.1} parent=11 // pred_fallthru
          _
      $region12: #{tpu_custom_call.1} parent=5 // pred_fallthru
        _
      %p256 = scmp.lt.s32.totalorder %s17, 2
      // Predicated region
      $region33: #{tpu_custom_call.1} parent=5 // pred_check
        %p257 = pneg %p256
      $region34: #{tpu_custom_call.1} parent=5 // pred_check_branch
        %259 = sbr.rel (%p257) target = $region36
      $region35: #{tpu_custom_call.1} parent=5 // pred_region
        // Predicated region
        $region37: #{tpu_custom_call.1} parent=35 // pred_check
          %p260 = pneg %p37
        $region38: #{tpu_custom_call.1} parent=35 // pred_check_branch
          %262 = sbr.rel (%p260) target = $region40
        $region39: #{tpu_custom_call.1} parent=35 // pred_region
          %p263 = scmp.lt.s32.totalorder %s17, 1
          %s264 = scalar_select %p263, %s17, 1
          %s265 = smul.addr %s264, 8
          %s266 = scalar_lea.vmem %s0, %s265
        $region40: #{tpu_custom_call.1} parent=35 // pred_fallthru
          _
        // Predicated region
        $region41: #{tpu_custom_call.1} parent=35 // pred_check
          %p267 = pneg %p63
        $region42: #{tpu_custom_call.1} parent=35 // pred_check_branch
          %269 = sbr.rel (%p267) target = $region44
        $region43: #{tpu_custom_call.1} parent=35 // pred_region
          %p270 = scmp.lt.s32.totalorder %s17, 1
          %s271 = scalar_select %p270, %s17, 1
          %s272 = smul.addr %s271, 8
          %s273 = scalar_lea.vmem %s1, %s272
        $region44: #{tpu_custom_call.1} parent=35 // pred_fallthru
          _
        // Predicated region
        $region45: #{tpu_custom_call.1} parent=35 // pred_check
          %p274 = pneg %p89
        $region46: #{tpu_custom_call.1} parent=35 // pred_check_branch
          %276 = sbr.rel (%p274) target = $region48
        $region47: #{tpu_custom_call.1} parent=35 // pred_region
          %s277 = smul.u32 8, %s17
          %p278 = scmp.lt.s32.totalorder %s277, 15
          %s279 = scalar_select %p278, %s277, 15
          %s280 = smul.addr %s279, 8
          %s281 = scalar_lea.vmem %s2, %s280
          %s282 = smul.u32 8, %s17
        $region48: #{tpu_custom_call.1} parent=35 // pred_fallthru
          _
      $region36: #{tpu_custom_call.1} parent=5 // pred_fallthru
        _
      %p283 = scmp.le.s32.totalorder 1, %s17
      %p284 = scmp.lt.s32.totalorder %s17, 3
      %p285 = pnand %p283, %p284
      %p286 = pneg %p285
      // Predicated region
      $region49: #{tpu_custom_call.1} parent=5 // pred_check
        _
      $region50: #{tpu_custom_call.1} parent=5 // pred_check_branch
        %288 = sbr.rel (%p285) target = $region52
      $region51: #{tpu_custom_call.1} parent=5 // pred_region
        %s289 = ssub.s32 %s17, 1
        %p290 = scmp.lt.s32.totalorder %s22, 1
        %s291 = scalar_select %p290, %s22, 1
        %s292 = smul.addr %s291, 8
        %s293 = scalar_lea.vmem %s0, %s292
        %p294 = pneg %p43
        %p295 = pneg %p40
        %p296 = scmp.lt.s32.totalorder %s22, 1
        %s297 = scalar_select %p296, %s22, 1
        %s298 = smul.addr %s297, 8
        %s299 = scalar_lea.vmem %s1, %s298
        %p300 = pneg %p69
        %p301 = pneg %p66
        %s302 = smul.u32 8, %s22
        %p303 = scmp.lt.s32.totalorder %s302, 15
        %s304 = scalar_select %p303, %s302, 15
        %s305 = smul.addr %s304, 8
        %s306 = scalar_lea.vmem %s2, %s305
        %p307 = pneg %p95
        %p308 = pneg %p92
        %p309 = pneg %p116
        %p310 = pneg %p113
        %p311 = pneg %p137
        %p312 = pneg %p134
        %p313 = pneg %p158
        %p314 = pneg %p155
        %p315 = pneg %p179
        %p316 = pneg %p176
        %p317 = pneg %p200
        %p318 = pneg %p197
        %p319 = pneg %p226
        %p320 = pneg %p223
        %s321 = sand.u32 %s213, 1
        %s322 = scalar_lea.sflag [#allocation3], %s321
        %s323 = sand.u32 %s213, 1
        %s324 = smul.addr %s323, 8
        %s325 = scalar_lea.vmem [#allocation2], %s324
        %p326 = scmp.lt.s32.totalorder %s22, 1
        %s327 = scalar_select %p326, %s22, 1
        %s328 = smul.addr %s327, 8
        %s329 = scalar_lea.vmem %s0, %s328
        %p330 = scmp.lt.s32.totalorder %s22, 1
        %s331 = scalar_select %p330, %s22, 1
        %s332 = smul.addr %s331, 8
        %s333 = scalar_lea.vmem %s1, %s332
        %s334 = smul.u32 8, %s22
        %p335 = scmp.lt.s32.totalorder %s334, 15
        %s336 = scalar_select %p335, %s334, 15
        %s337 = smul.addr %s336, 8
        %s338 = scalar_lea.vmem %s2, %s337
        %s339 = smul.u32 8, %s22
        %v340 = vld [vmem:[%s329] sm:$0xff]
        %v341 = vld [vmem:[%s3] sm:$0xff]
        %v342 = vld [vmem:[%s3 + $0x8] sm:$0xff]
        %v343 = vld [vmem:[%s3 + $0x10] sm:$0xff]
        %v344 = vld [vmem:[%s3 + $0x18] sm:$0xff]
        %v345 = vld [vmem:[%s333] sm:$0xff]
        %v346 = vld [vmem:[%s4] sm:$0xff]
        %v347 = vld [vmem:[%s4 + $0x8] sm:$0xff]
        %v348 = vld [vmem:[%s4 + $0x10] sm:$0xff]
        %v349 = vld [vmem:[%s4 + $0x18] sm:$0xff]
        %v350 = vld [vmem:[%s4 + $0x20] sm:$0xff]
        %v351 = vld [vmem:[%s4 + $0x28] sm:$0xff]
        %v352 = vld [vmem:[%s4 + $0x30] sm:$0xff]
        %v353 = vld [vmem:[%s4 + $0x38] sm:$0xff]
        %v354 = vld [vmem:[%s4 + $0x40] sm:$0xff]
        %v355 = vld [vmem:[%s4 + $0x48] sm:$0xff]
        %v356 = vld [vmem:[%s4 + $0x50] sm:$0xff]
        %v357 = vld [vmem:[%s4 + $0x58] sm:$0xff]
        %v358 = vld [vmem:[%s4 + $0x60] sm:$0xff]
        %v359 = vld [vmem:[%s4 + $0x68] sm:$0xff]
        %v360 = vld [vmem:[%s4 + $0x70] sm:$0xff]
        %v361 = vld [vmem:[%s4 + $0x78] sm:$0xff]
        %362 = vmatprep.subr.mxu0 0.0
        %363 = vmatpush1.msra.mxu0 %v346
        %364 = vmatprep.subr.mxu0 0.0
        %365 = vmatpush1.msra.mxu0 %v347
        %366 = vmatprep.subr.mxu0 0.0
        %367 = vmatpush1.msra.mxu0 %v348
        %368 = vmatprep.subr.mxu0 0.0
        %369 = vmatpush1.msra.mxu0 %v349
        %370 = vmatprep.subr.mxu0 0.0
        %371 = vmatpush1.msra.mxu0 %v350
        %372 = vmatprep.subr.mxu0 0.0
        %373 = vmatpush1.msra.mxu0 %v351
        %374 = vmatprep.subr.mxu0 0.0
        %375 = vmatpush1.msra.mxu0 %v352
        %376 = vmatprep.subr.mxu0 0.0
        %377 = vmatpush1.msra.mxu0 %v353
        %378 = vmatprep.subr.mxu0 0.0
        %379 = vmatpush1.msra.mxu0 %v354
        %380 = vmatprep.subr.mxu0 0.0
        %381 = vmatpush1.msra.mxu0 %v355
        %382 = vmatprep.subr.mxu0 0.0
        %383 = vmatpush1.msra.mxu0 %v356
        %384 = vmatprep.subr.mxu0 0.0
        %385 = vmatpush1.msra.mxu0 %v357
        %386 = vmatprep.subr.mxu0 0.0
        %387 = vmatpush1.msra.mxu0 %v358
        %388 = vmatprep.subr.mxu0 0.0
        %389 = vmatpush1.msra.mxu0 %v359
        %390 = vmatprep.subr.mxu0 0.0
        %391 = vmatpush1.msra.mxu0 %v360
        %392 = vmatprep.subr.mxu0 0.0
        %393 = vmatpush1.msra.mxu0 %v361
        %394 = vmatprep.subr.mxu0 0.0
        %395 = vmatpush1.msra.mxu0 0.0
        %396 = vmatprep.subr.mxu0 0.0
        %397 = vmatpush1.msra.mxu0 0.0
        %398 = vmatprep.subr.mxu0 0.0
        %399 = vmatpush1.msra.mxu0 0.0
        %400 = vmatprep.subr.mxu0 0.0
        %401 = vmatpush1.msra.mxu0 0.0
        %402 = vmatprep.subr.mxu0 0.0
        %403 = vmatpush1.msra.mxu0 0.0
        %404 = vmatprep.subr.mxu0 0.0
        %405 = vmatpush1.msra.mxu0 0.0
        %406 = vmatprep.subr.mxu0 0.0
        %407 = vmatpush1.msra.mxu0 0.0
        %408 = vmatprep.subr.mxu0 0.0
        %409 = vmatpush1.msra.mxu0 0.0
        %410 = vmatprep.subr.mxu0 0.0
        %411 = vmatpush1.msra.mxu0 0.0
        %412 = vmatprep.subr.mxu0 0.0
        %413 = vmatpush1.msra.mxu0 0.0
        %414 = vmatprep.subr.mxu0 0.0
        %415 = vmatpush1.msra.mxu0 0.0
        %416 = vmatprep.subr.mxu0 0.0
        %417 = vmatpush1.msra.mxu0 0.0
        %418 = vmatprep.subr.mxu0 0.0
        %419 = vmatpush1.msra.mxu0 0.0
        %420 = vmatprep.subr.mxu0 0.0
        %421 = vmatpush1.msra.mxu0 0.0
        %422 = vmatprep.subr.mxu0 0.0
        %423 = vmatpush1.msra.mxu0 0.0
        %424 = vmatprep.subr.mxu0 0.0
        %425 = vmatpush1.msra.mxu0 0.0
        %426 = vmatprep.mubr.f32.mxu0 0.0
        %427 = vmatmul.mubr.f32.gmra.mrb[0].mxu0 %v345
        %v428 = vpop.f32.mrb[0].mxu0
        %v429 = vadd.f32 0.0, %v428
        %v430 = vpop.f32.mrb[0].mxu0
        %431 = vdwg.mxu0
        %vm432 = vcmask 261120
        %v434 = vsel %vm432, %v340, 0
        %436 = vmatprep.subr.mxu0 0.0
        %437 = vmatpush1.msra.mxu0 %v341
        %438 = vmatprep.subr.mxu0 0.0
        %439 = vmatpush1.msra.mxu0 %v342
        %440 = vmatprep.subr.mxu0 0.0
        %441 = vmatpush1.msra.mxu0 %v343
        %442 = vmatprep.subr.mxu0 0.0
        %443 = vmatpush1.msra.mxu0 %v344
        %444 = vmatprep.subr.mxu0 0.0
        %445 = vmatpush1.msra.mxu0 0.0
        %446 = vmatprep.subr.mxu0 0.0
        %447 = vmatpush1.msra.mxu0 0.0
        %448 = vmatprep.subr.mxu0 0.0
        %449 = vmatpush1.msra.mxu0 0.0
        %450 = vmatprep.subr.mxu0 0.0
        %451 = vmatpush1.msra.mxu0 0.0
        %452 = vmatprep.subr.mxu0 0.0
        %453 = vmatpush1.msra.mxu0 0.0
        %454 = vmatprep.subr.mxu0 0.0
        %455 = vmatpush1.msra.mxu0 0.0
        %456 = vmatprep.subr.mxu0 0.0
        %457 = vmatpush1.msra.mxu0 0.0
        %458 = vmatprep.subr.mxu0 0.0
        %459 = vmatpush1.msra.mxu0 0.0
        %460 = vmatprep.subr.mxu0 0.0
        %461 = vmatpush1.msra.mxu0 0.0
        %462 = vmatprep.subr.mxu0 0.0
        %463 = vmatpush1.msra.mxu0 0.0
        %464 = vmatprep.subr.mxu0 0.0
        %465 = vmatpush1.msra.mxu0 0.0
        %466 = vmatprep.subr.mxu0 0.0
        %467 = vmatpush1.msra.mxu0 0.0
        %468 = vmatprep.subr.mxu0 0.0
        %469 = vmatpush1.msra.mxu0 0.0
        %470 = vmatprep.subr.mxu0 0.0
        %471 = vmatpush1.msra.mxu0 0.0
        %472 = vmatprep.subr.mxu0 0.0
        %473 = vmatpush1.msra.mxu0 0.0
        %474 = vmatprep.subr.mxu0 0.0
        %475 = vmatpush1.msra.mxu0 0.0
        %476 = vmatprep.subr.mxu0 0.0
        %477 = vmatpush1.msra.mxu0 0.0
        %478 = vmatprep.subr.mxu0 0.0
        %479 = vmatpush1.msra.mxu0 0.0
        %480 = vmatprep.subr.mxu0 0.0
        %481 = vmatpush1.msra.mxu0 0.0
        %482 = vmatprep.subr.mxu0 0.0
        %483 = vmatpush1.msra.mxu0 0.0
        %484 = vmatprep.subr.mxu0 0.0
        %485 = vmatpush1.msra.mxu0 0.0
        %486 = vmatprep.subr.mxu0 0.0
        %487 = vmatpush1.msra.mxu0 0.0
        %488 = vmatprep.subr.mxu0 0.0
        %489 = vmatpush1.msra.mxu0 0.0
        %490 = vmatprep.subr.mxu0 0.0
        %491 = vmatpush1.msra.mxu0 0.0
        %492 = vmatprep.subr.mxu0 0.0
        %493 = vmatpush1.msra.mxu0 0.0
        %494 = vmatprep.subr.mxu0 0.0
        %495 = vmatpush1.msra.mxu0 0.0
        %496 = vmatprep.subr.mxu0 0.0
        %497 = vmatpush1.msra.mxu0 0.0
        %498 = vmatprep.subr.mxu0 0.0
        %499 = vmatpush1.msra.mxu0 0.0
        %500 = vmatprep.mubr.f32.mxu0 0.0
        %501 = vmatmul.mubr.f32.gmra.mrb[0].mxu0 %v434
        %v502 = vpop.f32.mrb[0].mxu0
        %v503 = vadd.f32 %v429, %v502
        %v504 = vpop.f32.mrb[0].mxu0
        %505 = vdwg.mxu0
        %v506 = vld [vmem:[%s5] sm:$0x1]
        %v508 = vlaneseq
        %v509 = vshrl.u32 %v508, 7
        %v510 = vsub.s32 0, %v509
        %v511 = vrot.slane %v506, %v510
        %v513 = vadd.f32 %v503, %v511
        %v514 = vmax.f32 %v513, 0.0
        %v515 = vld [vmem:[%s6] sm:$0xff]
        %v516 = vld [vmem:[%s6 + $0x8] sm:$0xff]
        %v517 = vld [vmem:[%s7] sm:$0x1]
        %v519 = vlaneseq
        %v520 = vshrl.u32 %v519, 7
        %v521 = vsub.s32 0, %v520
        %v522 = vrot.slane %v517, %v521
        %vm524 = vcmask 130048
        %v526 = vsel %vm524, %v514, 0
        %528 = vmatprep.subr.mxu0 0.0
        %529 = vmatpush1.msra.mxu0 %v515
        %530 = vmatprep.subr.mxu0 0.0
        %531 = vmatpush1.msra.mxu0 %v516
        %532 = vmatprep.subr.mxu0 0.0
        %533 = vmatpush1.msra.mxu0 0.0
        %534 = vmatprep.subr.mxu0 0.0
        %535 = vmatpush1.msra.mxu0 0.0
        %536 = vmatprep.subr.mxu0 0.0
        %537 = vmatpush1.msra.mxu0 0.0
        %538 = vmatprep.subr.mxu0 0.0
        %539 = vmatpush1.msra.mxu0 0.0
        %540 = vmatprep.subr.mxu0 0.0
        %541 = vmatpush1.msra.mxu0 0.0
        %542 = vmatprep.subr.mxu0 0.0
        %543 = vmatpush1.msra.mxu0 0.0
        %544 = vmatprep.subr.mxu0 0.0
        %545 = vmatpush1.msra.mxu0 0.0
        %546 = vmatprep.subr.mxu0 0.0
        %547 = vmatpush1.msra.mxu0 0.0
        %548 = vmatprep.subr.mxu0 0.0
        %549 = vmatpush1.msra.mxu0 0.0
        %550 = vmatprep.subr.mxu0 0.0
        %551 = vmatpush1.msra.mxu0 0.0
        %552 = vmatprep.subr.mxu0 0.0
        %553 = vmatpush1.msra.mxu0 0.0
        %554 = vmatprep.subr.mxu0 0.0
        %555 = vmatpush1.msra.mxu0 0.0
        %556 = vmatprep.subr.mxu0 0.0
        %557 = vmatpush1.msra.mxu0 0.0
        %558 = vmatprep.subr.mxu0 0.0
        %559 = vmatpush1.msra.mxu0 0.0
        %560 = vmatprep.subr.mxu0 0.0
        %561 = vmatpush1.msra.mxu0 0.0
        %562 = vmatprep.subr.mxu0 0.0
        %563 = vmatpush1.msra.mxu0 0.0
        %564 = vmatprep.subr.mxu0 0.0
        %565 = vmatpush1.msra.mxu0 0.0
        %566 = vmatprep.subr.mxu0 0.0
        %567 = vmatpush1.msra.mxu0 0.0
        %568 = vmatprep.subr.mxu0 0.0
        %569 = vmatpush1.msra.mxu0 0.0
        %570 = vmatprep.subr.mxu0 0.0
        %571 = vmatpush1.msra.mxu0 0.0
        %572 = vmatprep.subr.mxu0 0.0
        %573 = vmatpush1.msra.mxu0 0.0
        %574 = vmatprep.subr.mxu0 0.0
        %575 = vmatpush1.msra.mxu0 0.0
        %576 = vmatprep.subr.mxu0 0.0
        %577 = vmatpush1.msra.mxu0 0.0
        %578 = vmatprep.subr.mxu0 0.0
        %579 = vmatpush1.msra.mxu0 0.0
        %580 = vmatprep.subr.mxu0 0.0
        %581 = vmatpush1.msra.mxu0 0.0
        %582 = vmatprep.subr.mxu0 0.0
        %583 = vmatpush1.msra.mxu0 0.0
        %584 = vmatprep.subr.mxu0 0.0
        %585 = vmatpush1.msra.mxu0 0.0
        %586 = vmatprep.subr.mxu0 0.0
        %587 = vmatpush1.msra.mxu0 0.0
        %588 = vmatprep.subr.mxu0 0.0
        %589 = vmatpush1.msra.mxu0 0.0
        %590 = vmatprep.subr.mxu0 0.0
        %591 = vmatpush1.msra.mxu0 0.0
        %592 = vmatprep.mubr.f32.mxu0 0.0
        %593 = vmatmul.mubr.f32.gmra.mrb[0].mxu0 %v526
        %v594 = vpop.f32.mrb[0].mxu0
        %v595 = vadd.f32 %v522, %v594
        %v596 = vpop.f32.mrb[0].mxu0
        %597 = vdwg.mxu0
        %vm598 = vcmask 64512
        %v599 = vsel %vm598, %v595, -inf
        %600 = vmax.xlane.f32.xlu0 %v599
        %v601 = vpop.xlane.xlu0 %600
        %v602 = vsub.f32 %v595, %v601
        %v603 = vmul.f32 %v602, 1.442695
        %v604 = vpow.pop %v603
        %v605 = vsel %vm598, %v604, 0.0
        %606 = vadd.xlane.f32.xlu0 %v605
        %v607 = vpop.xlane.xlu0 %606
        %v608 = vrcp.pop %v607
        %v609 = vmul.f32 %v604, %v608
        %v610 = vlaneseq
        %v611 = vshrl.u32 %v610, 7
        %v612 = vsub.s32 0, %v611
        %v613 = vrot.slane %v609, %v612
        %615 = vbcast.lane.b32.xlu0 %v613, 256
        %v616 = vpop.permute.xlu0 %615
        %v617 = vlaneseq
        %v618 = vshrl.u32 %v617, 7
        %v619 = vsub.s32 1, %v618
        %v620 = vrot.slane %v609, %v619
        %622 = vbcast.lane.b32.xlu0 %v620, 256
        %v623 = vpop.permute.xlu0 %622
        %v624 = vlaneseq
        %v625 = vshrl.u32 %v624, 7
        %v626 = vsub.s32 2, %v625
        %v627 = vrot.slane %v609, %v626
        %629 = vbcast.lane.b32.xlu0 %v627, 256
        %v630 = vpop.permute.xlu0 %629
        %v631 = vlaneseq
        %v632 = vshrl.u32 %v631, 7
        %v633 = vsub.s32 3, %v632
        %v634 = vrot.slane %v609, %v633
        %636 = vbcast.lane.b32.xlu0 %v634, 256
        %v637 = vpop.permute.xlu0 %636
        %v638 = vlaneseq
        %v639 = vshrl.u32 %v638, 7
        %v640 = vsub.s32 4, %v639
        %v641 = vrot.slane %v609, %v640
        %643 = vbcast.lane.b32.xlu0 %v641, 256
        %v644 = vpop.permute.xlu0 %643
        %v645 = vlaneseq
        %v646 = vshrl.u32 %v645, 7
        %v647 = vsub.s32 5, %v646
        %v648 = vrot.slane %v609, %v647
        %650 = vbcast.lane.b32.xlu0 %v648, 256
        %v651 = vpop.permute.xlu0 %650
        %v652 = vlaneseq
        %v653 = vshrl.u32 %v652, 7
        %v654 = vsub.s32 6, %v653
        %v655 = vrot.slane %v609, %v654
        %657 = vbcast.lane.b32.xlu0 %v655, 256
        %v658 = vpop.permute.xlu0 %657
        %v659 = vlaneseq
        %v660 = vshrl.u32 %v659, 7
        %v661 = vsub.s32 7, %v660
        %v662 = vrot.slane %v609, %v661
        %664 = vbcast.lane.b32.xlu0 %v662, 256
        %v665 = vpop.permute.xlu0 %664
        %v666 = vld [vmem:[%s338] sm:$0xff]
        %v667 = vld [vmem:[%s338 + $0x8] sm:$0xff]
        %v668 = vld [vmem:[%s338 + $0x10] sm:$0xff]
        %v669 = vld [vmem:[%s338 + $0x18] sm:$0xff]
        %v670 = vld [vmem:[%s338 + $0x20] sm:$0xff]
        %v671 = vld [vmem:[%s338 + $0x28] sm:$0xff]
        %v672 = vld [vmem:[%s338 + $0x30] sm:$0xff]
        %v673 = vld [vmem:[%s338 + $0x38] sm:$0xff]
        %v674 = vmul.f32 %v616, %v666
        %v675 = vmul.f32 %v623, %v667
        %v676 = vmul.f32 %v630, %v668
        %v677 = vmul.f32 %v637, %v669
        %v678 = vmul.f32 %v644, %v670
        %v679 = vmul.f32 %v651, %v671
        %v680 = vmul.f32 %v658, %v672
        %v681 = vmul.f32 %v665, %v673
        %v682 = vrot.slane %v674, 4
        %v683 = vadd.f32 %v674, %v682
        %v684 = vrot.slane %v683, 2
        %v685 = vadd.f32 %v683, %v684
        %v686 = vrot.slane %v685, 1
        %v687 = vadd.f32 %v685, %v686
        %v688 = vrot.slane %v675, 4
        %v689 = vadd.f32 %v675, %v688
        %v690 = vrot.slane %v689, 2
        %v691 = vadd.f32 %v689, %v690
        %v692 = vrot.slane %v691, 1
        %v693 = vadd.f32 %v691, %v692
        %v694 = vrot.slane %v676, 4
        %v695 = vadd.f32 %v676, %v694
        %v696 = vrot.slane %v695, 2
        %v697 = vadd.f32 %v695, %v696
        %v698 = vrot.slane %v697, 1
        %v699 = vadd.f32 %v697, %v698
        %v700 = vrot.slane %v677, 4
        %v701 = vadd.f32 %v677, %v700
        %v702 = vrot.slane %v701, 2
        %v703 = vadd.f32 %v701, %v702
        %v704 = vrot.slane %v703, 1
        %v705 = vadd.f32 %v703, %v704
        %v706 = vrot.slane %v678, 4
        %v707 = vadd.f32 %v678, %v706
        %v708 = vrot.slane %v707, 2
        %v709 = vadd.f32 %v707, %v708
        %v710 = vrot.slane %v709, 1
        %v711 = vadd.f32 %v709, %v710
        %v712 = vrot.slane %v679, 4
        %v713 = vadd.f32 %v679, %v712
        %v714 = vrot.slane %v713, 2
        %v715 = vadd.f32 %v713, %v714
        %v716 = vrot.slane %v715, 1
        %v717 = vadd.f32 %v715, %v716
        %v718 = vrot.slane %v680, 4
        %v719 = vadd.f32 %v680, %v718
        %v720 = vrot.slane %v719, 2
        %v721 = vadd.f32 %v719, %v720
        %v722 = vrot.slane %v721, 1
        %v723 = vadd.f32 %v721, %v722
        %v724 = vrot.slane %v681, 4
        %v725 = vadd.f32 %v681, %v724
        %v726 = vrot.slane %v725, 2
        %v727 = vadd.f32 %v725, %v726
        %v728 = vrot.slane %v727, 1
        %v729 = vadd.f32 %v727, %v728
        %vm738 = vcmask 1041409
        %v739 = vsel %vm738, %v693, %v687
        %vm740 = vcmask 1042434
        %v741 = vsel %vm740, %v699, %v739
        %vm742 = vcmask 1043459
        %v743 = vsel %vm742, %v705, %v741
        %vm744 = vcmask 1044484
        %v745 = vsel %vm744, %v711, %v743
        %vm746 = vcmask 1045509
        %v747 = vsel %vm746, %v717, %v745
        %vm748 = vcmask 1046534
        %v749 = vsel %vm748, %v723, %v747
        %vm750 = vcmask 1047559
        %v751 = vsel %vm750, %v729, %v749
        %753 = vst [vmem:[%s325] sm:$0xff] %v751
        %s754 = sand.u32 %s213, 1
        %s755 = scalar_lea.sflag [#allocation3], %s754
        %s756 = sand.u32 %s213, 1
        %s757 = smul.addr %s756, 8
        %s758 = scalar_lea.vmem [#allocation2], %s757
        // Predicated region
        $region53: #{tpu_custom_call.1} parent=51 // pred_check
          %p759 = pneg %p223
        $region54: #{tpu_custom_call.1} parent=51 // pred_check_branch
          %761 = sbr.rel (%p759) target = $region56
        $region55: #{tpu_custom_call.1} parent=51 // pred_region
          %s763 = ssub.s32 128, 128
          %764 = vsyncadd %s755, %s763
          %s765 = smul.addr %s22, 128
          %s766 = scalar_lea.hbm %s8, %s765
          %s768 = sshll.u32 %s758, 4
          %s769 = int_to_ptr.vmem [resolvable:$true] %s768
          %771 = dma.vmem_to_hbm [thread:$0]  %s769, 128, %s766, %s755
        $region56: #{tpu_custom_call.1} parent=51 // pred_fallthru
          _
      $region52: #{tpu_custom_call.1} parent=5 // pred_fallthru
        _
      %p772 = scmp.le.s32.totalorder 2, %s17
      // Predicated region
      $region57: #{tpu_custom_call.1} parent=5 // pred_check
        %p773 = pneg %p772
      $region58: #{tpu_custom_call.1} parent=5 // pred_check_branch
        %775 = sbr.rel (%p773) target = $region60
      $region59: #{tpu_custom_call.1} parent=5 // pred_region
        %s776 = ssub.s32 %s17, 2
        // Predicated region
        $region61: #{tpu_custom_call.1} parent=59 // pred_check
          %p777 = pneg %p229
        $region62: #{tpu_custom_call.1} parent=59 // pred_check_branch
          %779 = sbr.rel (%p777) target = $region64
        $region63: #{tpu_custom_call.1} parent=59 // pred_region
          %s780 = sand.u32 %s214, 1
          %s781 = scalar_lea.sflag [#allocation3], %s780
          %s782 = sand.u32 %s214, 1
          %s783 = smul.addr %s782, 8
          %s784 = scalar_lea.vmem [#allocation2], %s783
          %785 = dma.done %s781, 128
        $region64: #{tpu_custom_call.1} parent=59 // pred_fallthru
          _
      $region60: #{tpu_custom_call.1} parent=5 // pred_fallthru
        _
    $region6: #{tpu_custom_call.1} parent=1 // loop_footer
      %s21 = sadd.s32 1, %s17
    $region7: #{tpu_custom_call.1} parent=1 // loop_footer_branch
      %16 = sbr.rel target = $region3
    $region8: #{tpu_custom_call.1} parent=1 // loop_exit
      _
    %786 = vsyncpa [#allocation3], 1
    %s787 = scalar_lea.sflag [#allocation3], 1
    %788 = vsyncpa %s787, 1

</llo_original>
